<compile_context>
chip_gen: v6e
topology: v6e:2x2x1
jax: 0.10.0
libtpu: 0.0.40
codegen_flags: <defaults>
</compile_context>

<pallas_src>
import jax
import jax.numpy as jnp
from jax import lax
from jax.experimental import pallas as pl
from jax.experimental.pallas import tpu as pltpu


def _round_up(x: int, m: int) -> int:
    return (x + m - 1) // m * m


def _cdiv(a: int, b: int) -> int:
    return -(-a // b)


def _rope_cache_kernel(tab_ref, cos_ref, sin_ref):
    """Compute one row-tile of the (lane-packed) rotary cos/sin cache.

    tab_ref : (2, L) f32, resident across tiles.
              tab[0, l] = k * inv_freq[(l % dim) % (dim//2)]
              tab[1, l] = (l // dim) * inv_freq[(l % dim) % (dim//2)]
              so angle[r, l] = (r*k + l//dim) * inv_freq[...]
                             = r * tab[0, l] + tab[1, l]
    cos_ref / sin_ref : (row_tile, L) output tiles in the cache dtype.
    """
    rt = cos_ref.shape[0]
    # Packed-row index of every row in this tile: (rt, 1) f32 (2-D iota, TPU-safe).
    row = (lax.broadcasted_iota(jnp.int32, (rt, 1), 0)
           + pl.program_id(0) * rt).astype(jnp.float32)
    tab = tab_ref[...]                                   # (2, L) f32
    angle = row * tab[0:1, :] + tab[1:2, :]              # (rt, L) f32
    cos_ref[...] = jnp.cos(angle).astype(cos_ref.dtype)
    sin_ref[...] = jnp.sin(angle).astype(sin_ref.dtype)


def _rope_cos_sin_cache(seq_len: int, dim: int, base: float, out_dtype):
    """Returns (cos, sin), each (seq_len, dim) in out_dtype."""
    seq_len, dim = int(seq_len), int(dim)
    half = dim // 2

    # Lane-dense packing factor: k consecutive positions per 128-lane row.
    if dim < 128 and 128 % dim == 0 and seq_len % (128 // dim) == 0:
        k = 128 // dim
    else:
        k = 1  # dim >= 128 (already lane-dense) or awkward shapes: fall back.
    L = k * dim
    n_rows = seq_len // k

    # inv_freq exactly as the PyTorch module computes it (float32).
    inv_freq = 1.0 / (base ** (jnp.arange(0, dim, 2, dtype=jnp.float32) / dim))
    lane = jnp.arange(L)
    f_lane = inv_freq[(lane % dim) % half]               # [freqs|freqs] duplication baked in
    off = (lane // dim).astype(jnp.float32)              # position offset within packed row
    tab = jnp.stack([k * f_lane, off * f_lane])          # (2, L) f32

    # Row tiling: big tiles to amortise per-step overhead, but aim for >= 4
    # grid steps (pipelining + v7x megacore sharding). 16-row alignment keeps
    # sublane packing clean for both f32 and bf16 caches.
    row_tile = min(1024, _round_up(max(1, _cdiv(n_rows, 4)), 16))
    grid = _cdiv(n_rows, row_tile)

    cos_p, sin_p = pl.pallas_call(
        _rope_cache_kernel,
        out_shape=(
            jax.ShapeDtypeStruct((n_rows, L), out_dtype),
            jax.ShapeDtypeStruct((n_rows, L), out_dtype),
        ),
        grid_spec=pltpu.PrefetchScalarGridSpec(
            num_scalar_prefetch=0,
            grid=(grid,),
            in_specs=[
                # Tiny (2, L) frequency/phase table, same block every step.
                pl.BlockSpec((2, L), lambda i: (0, 0)),
            ],
            out_specs=(
                pl.BlockSpec((row_tile, L), lambda i: (i, 0)),   # cos tile
                pl.BlockSpec((row_tile, L), lambda i: (i, 0)),   # sin tile
            ),
        ),
        compiler_params=pltpu.CompilerParams(
            # Independent row tiles: shard across TensorCores on v7x megacore.
            dimension_semantics=("parallel",),
        ),
    )(tab)

    # Row-major (n_rows, k*dim) -> (seq_len, dim): layout-preserving unpack.
    return cos_p.reshape(seq_len, dim), sin_p.reshape(seq_len, dim)


class LlamaRotaryEmbedding:
    """JAX/Pallas mirror of the PyTorch module: cache once, slice per forward."""

    def __init__(self, dim, max_position_embeddings=2048, base=10000.0,
                 dtype=jnp.float32):
        self.dim = int(dim)
        self.max_position_embeddings = int(max_position_embeddings)
        self.base = float(base)
        self._set_cos_sin_cache(self.max_position_embeddings, jnp.dtype(dtype))

    def _set_cos_sin_cache(self, seq_len, dtype):
        self.max_seq_len_cached = int(seq_len)
        cos, sin = _rope_cos_sin_cache(seq_len, self.dim, self.base, dtype)
        self.cos_cached = cos[None, None, :, :]
        self.sin_cached = sin[None, None, :, :]

    def __call__(self, x, seq_len=None):
        if seq_len is None:
            seq_len = x.shape[-2]
        if seq_len > self.max_seq_len_cached:
            self._set_cos_sin_cache(seq_len, jnp.dtype(x.dtype))
        return (self.cos_cached[:, :, :seq_len, :].astype(x.dtype),
                self.sin_cached[:, :, :seq_len, :].astype(x.dtype))


def llama_rotary_embedding_forward(x, seq_len, *, dim,
                                   max_position_embeddings=2048,
                                   base=10000.0):
    """One-shot functional forward (builds the cache at seq_len in x.dtype).

    Prefer the LlamaRotaryEmbedding class on hot paths: it caches the table
    to max_position_embeddings and only slices per call.
    """
    del max_position_embeddings
    cos, sin = _rope_cos_sin_cache(int(seq_len), int(dim), float(base),
                                   jnp.dtype(x.dtype))
    return cos[None, None, :, :], sin[None, None, :, :]


if __name__ == "__main__":
    key = jax.random.PRNGKey(0)

    # x is (batch=2, heads=4, seq=8, head_dim=32); only dtype/shape are used.
    batch, heads, seq_len, head_dim = 2, 4, 8, 32
    x = jax.random.normal(key, (batch, heads, seq_len, head_dim),
                          dtype=jnp.float32)

    def ref_cos_sin(s, d, dtype):
        inv_freq = 1.0 / (10000.0 ** (jnp.arange(0, d, 2,
                                                 dtype=jnp.float32) / d))
        t = jnp.arange(s, dtype=jnp.float32)
        freqs = jnp.einsum("i,j->ij", t, inv_freq)
        emb = jnp.concatenate([freqs, freqs], axis=-1)
        return (jnp.cos(emb)[None, None, :, :].astype(dtype),
                jnp.sin(emb)[None, None, :, :].astype(dtype))

    # Module with a small cached table (mirrors PyTorch registered buffers).
    rope = LlamaRotaryEmbedding(dim=head_dim, max_position_embeddings=16)

    # 1) cached path (seq_len <= max_seq_len_cached), f32.
    cos, sin = rope(x, seq_len)
    cos = jax.block_until_ready(cos)
    sin = jax.block_until_ready(sin)
    ref_c, ref_s = ref_cos_sin(seq_len, head_dim, x.dtype)
    assert cos.shape == (1, 1, seq_len, head_dim) and cos.dtype == x.dtype
    assert sin.shape == (1, 1, seq_len, head_dim) and sin.dtype == x.dtype
    assert bool(jnp.allclose(cos, ref_c, atol=1e-4))
    assert bool(jnp.allclose(sin, ref_s, atol=1e-4))

    # 2) rebuild path (seq_len > cached), bf16 x -> cache rebuilt in bf16.
    seq2 = 24
    x_bf16 = x.astype(jnp.bfloat16)
    cos2, sin2 = rope(x_bf16, seq2)
    cos2 = jax.block_until_ready(cos2)
    sin2 = jax.block_until_ready(sin2)
    ref_c2, ref_s2 = ref_cos_sin(seq2, head_dim, jnp.bfloat16)
    assert cos2.shape == (1, 1, seq2, head_dim) and cos2.dtype == jnp.bfloat16
    assert sin2.shape == (1, 1, seq2, head_dim) and sin2.dtype == jnp.bfloat16
    assert bool(jnp.allclose(cos2.astype(jnp.float32),
                             ref_c2.astype(jnp.float32), atol=1e-2))
    assert bool(jnp.allclose(sin2.astype(jnp.float32),
                             ref_s2.astype(jnp.float32), atol=1e-2))

    print("KERNEL_OK")
</pallas_src>

<mosaic_0001>
module attributes {stable_mosaic.version = 11 : i64} {
  func.func @_rope_cache_kernel(%arg0: i32, %arg1: memref<2x128xf32, #tpu.memory_space<vmem>>, %arg2: memref<16x128xf32, #tpu.memory_space<vmem>>, %arg3: memref<16x128xf32, #tpu.memory_space<vmem>>) attributes {dimension_semantics = [#tpu.dimension_semantics<parallel>], iteration_bounds = array<i64: 1>, scalar_prefetch = 0 : i64, scratch_operands = 0 : i64, tpu.core_type = #tpu.core_type<tc>, window_params = [{pipeline_mode = #tpu.pipeline_mode<synchronous>, transform_indices = @transform_0, window_bounds = array<i64: 2, 128>}, {transform_indices = @transform_1, window_bounds = array<i64: 16, 128>}, {transform_indices = @transform_2, window_bounds = array<i64: 16, 128>}]} {
    %0 = tpu.iota {dimensions = array<i32: 0>} : vector<16x1xi32>
    %c16_i32 = arith.constant 16 : i32
    %1 = arith.muli %arg0, %c16_i32 : i32
    %2 = vector.broadcast %1 : i32 to vector<16x1xi32>
    %3 = arith.addi %0, %2 : vector<16x1xi32>
    %4 = arith.sitofp %3 : vector<16x1xi32> to vector<16x1xf32>
    %c0 = arith.constant 0 : index
    %c0_0 = arith.constant 0 : index
    %5 = vector.load %arg1[%c0, %c0_0] : memref<2x128xf32, #tpu.memory_space<vmem>>, vector<2x128xf32>
    %6 = vector.extract_strided_slice %5 {offsets = [0, 0], sizes = [1, 128], strides = [1, 1]} : vector<2x128xf32> to vector<1x128xf32>
    %7 = vector.broadcast %4 : vector<16x1xf32> to vector<16x128xf32>
    %8 = vector.broadcast %6 : vector<1x128xf32> to vector<16x128xf32>
    %9 = arith.mulf %7, %8 : vector<16x128xf32>
    %10 = vector.extract_strided_slice %5 {offsets = [1, 0], sizes = [1, 128], strides = [1, 1]} : vector<2x128xf32> to vector<1x128xf32>
    %11 = vector.broadcast %10 : vector<1x128xf32> to vector<16x128xf32>
    %12 = arith.addf %9, %11 : vector<16x128xf32>
    %13 = math.cos %12 : vector<16x128xf32>
    %c0_1 = arith.constant 0 : index
    %c0_2 = arith.constant 0 : index
    %14 = vector.load %arg2[%c0_1, %c0_2] : memref<16x128xf32, #tpu.memory_space<vmem>>, vector<16x128xf32>
    tpu.vector_store %arg2[%c0_1, %c0_2], %13 {strides = array<i32>} : memref<16x128xf32, #tpu.memory_space<vmem>>, vector<16x128xf32>,
    %15 = math.sin %12 : vector<16x128xf32>
    %c0_3 = arith.constant 0 : index
    %c0_4 = arith.constant 0 : index
    %16 = vector.load %arg3[%c0_3, %c0_4] : memref<16x128xf32, #tpu.memory_space<vmem>>, vector<16x128xf32>
    tpu.vector_store %arg3[%c0_3, %c0_4], %15 {strides = array<i32>} : memref<16x128xf32, #tpu.memory_space<vmem>>, vector<16x128xf32>,
    return
  }
  func.func @transform_0(%arg0: i32) -> (i32, i32) {
    %c0_i32 = arith.constant 0 : i32
    %c0_i32_0 = arith.constant 0 : i32
    %c0_i32_1 = arith.constant 0 : i32
    return %c0_i32, %c0_i32_0 : i32, i32
  }
  func.func @transform_1(%arg0: i32) -> (i32, i32) {
    %c0_i32 = arith.constant 0 : i32
    %c0_i32_0 = arith.constant 0 : i32
    return %arg0, %c0_i32 : i32, i32
  }
  func.func @transform_2(%arg0: i32) -> (i32, i32) {
    %c0_i32 = arith.constant 0 : i32
    %c0_i32_0 = arith.constant 0 : i32
    return %arg0, %c0_i32 : i32, i32
  }
}

</mosaic_0001>

<llo_original>
// kernel: tpu_custom_call.1
$region0: #{tpu_custom_call.1}
  #allocation0 [shape = 'u32[]', space=smem, size = 0x4, offset = 0x4, fixed_abs, tag = 'smem constant byte address 0x4 - core index']
  #allocation1 [shape = 'u32[144,128]{1,0:T(1,128)}', space=vmem, size = 0x12000, scoped, tag = 'internal scratch']
  %s0 = inlined_call_operand.hbm [shape: f32[2,128], index: 0, kind: input, shape index: {}]
  %s1 = inlined_call_operand.hbm [shape: f32[4,128], index: 1, kind: output, shape index: {0}]
  %s2 = inlined_call_operand.hbm [shape: f32[4,128], index: 2, kind: output, shape index: {1}]
  %3 = xla_tuple %s1, %s2
  %s4 = sld [smem:[#allocation0]]
  $region26: #{tpu_custom_call.1} parent=0
    _
  %s6 = ssub.s32 1, %s4
  %s7 = scalar_select 0, %s6, %s4
  $region1: #{tpu_custom_call.1} parent=0
    #allocation2 [shape = 'u8[1024]{0}', space=vmem, size = 0x400, scoped, tag = 'input window, operand 0, single buffered']
    #allocation3 [shape = 's32[1]{0}', space=sflag, size = 0x4, scoped, tag = 'scoped memory for tpu_custom_call.1']
    #allocation4 [shape = 's32[1]{0}', space=sflag, size = 0x4, scoped, tag = 'scoped memory for tpu_custom_call.1']
    #allocation5 [shape = 'u8[8192]{0}', space=vmem, size = 0x2000, scoped, tag = 'output window, operand 0, single buffered']
    #allocation6 [shape = 'u8[8192]{0}', space=vmem, size = 0x2000, scoped, tag = 'output window, operand 1, single buffered']
    #allocation7 [shape = 's32[1]{0}', space=sflag, size = 0x4, scoped, tag = 'scoped memory for tpu_custom_call.1']
    %8 = vsyncpa [#allocation3], 0
    %9 = vsyncpa [#allocation4], 0
    %10 = vsyncpa [#allocation7], 0
    // Predicated region
    $region2: #{tpu_custom_call.1} parent=1 // pred_check
      _
    $region3: #{tpu_custom_call.1} parent=1 // pred_check_branch
      %12 = sbr.rel (0) target = $region5
    $region4: #{tpu_custom_call.1} parent=1 // pred_region
      %s14 = ssub.s32 32, 32
      %15 = vsyncadd [#allocation3], %s14
      %s17 = sshll.u32 [#allocation2], 4
      %s18 = int_to_ptr.vmem [resolvable:$true] %s17
      %20 = dma.hbm_to_vmem [thread:$0]  %s0, 32, %s18, [#allocation3]
    $region5: #{tpu_custom_call.1} parent=1 // pred_fallthru
      _
    // Predicated region
    $region6: #{tpu_custom_call.1} parent=1 // pred_check
      _
    $region7: #{tpu_custom_call.1} parent=1 // pred_check_branch
      %22 = sbr.rel (0) target = $region9
    $region8: #{tpu_custom_call.1} parent=1 // pred_region
      %23 = dma.done [#allocation3], 32
    $region9: #{tpu_custom_call.1} parent=1 // pred_fallthru
      _
    %v24 = vlaneseq
    %v25 = vshrl.u32 %v24, 7
    %v26 = vadd.s32 %v25, 8
    %s27 = smul.u32 0, 16
    %v28 = vstv %s27
    %v29 = vadd.s32 %v25, %v28
    %v30 = vadd.s32 %v26, %v28
    %v31 = vcvt.s32.f32 %v29
    %v32 = vcvt.s32.f32 %v30
    %v33 = vld [vmem:[#allocation2] sm:$0x3]
    %v34 = vlaneseq
    %v35 = vshrl.u32 %v34, 7
    %v36 = vsub.s32 0, %v35
    %v37 = vrot.slane %v33, %v36
    %v38 = vmul.f32 %v31, %v37
    %v39 = vmul.f32 %v32, %v37
    %v40 = vlaneseq
    %v41 = vshrl.u32 %v40, 7
    %v42 = vsub.s32 1, %v41
    %v43 = vrot.slane %v33, %v42
    %v44 = vadd.f32 %v38, %v43
    %v45 = vadd.f32 %v39, %v43
    %v46 = vand.u32 2147483647, %v44
    %vm47 = vcmp.le.f32.partialorder %v46, 0.7853982
    %vm48 = vcmp.lt.s32.totalorder %v44, 0
    %v49 = vand.u32 %v44, 2139095040
    %v50 = vshrl.u32 %v49, 23
    %v51 = vsub.s32 %v50, 127
    %v52 = vand.u32 2147483647, %v44
    %v53 = vand.u32 %v52, 8388607
    %v54 = vor.u32 %v53, 8388608
    %v55 = vsub.s32 0, %v54
    %v56 = vadd.s32 %v51, 1
    %vm57 = vcmp.gt.s32.totalorder %v56, 0
    %v58 = vsel %vm57, %v56, 0
    %v59 = vshrl.u32 %v58, 5
    %v60 = vand.u32 %v58, 31
    %v61 = vsub.s32 32, %v60
    %v62 = vshrl.u32 683565275, %v61
    %v63 = vshll.u32 683565275, %v60
    %v64 = vshrl.u32 2475754826, %v61
    %v65 = vor.u32 %v63, %v64
    %v66 = vshll.u32 2475754826, %v60
    %v67 = vshrl.u32 2131351028, %v61
    %v68 = vor.u32 %v66, %v67
    %v69 = vshll.u32 2131351028, %v60
    %v70 = vshrl.u32 2102212464, %v61
    %v71 = vor.u32 %v69, %v70
    %v72 = vshll.u32 2102212464, %v60
    %v73 = vshrl.u32 920167782, %v61
    %v74 = vor.u32 %v72, %v73
    %v75 = vshll.u32 920167782, %v60
    %v76 = vshrl.u32 1326507024, %v61
    %v77 = vor.u32 %v75, %v76
    %vm78 = vcmp.lt.s32.totalorder %v59, 1
    %vm79 = vcmp.lt.s32.totalorder %v59, 2
    %vm80 = vcmp.lt.s32.totalorder %v59, 3
    %vm81 = vcmp.lt.s32.totalorder %v59, 4
    %v82 = vsel %vm78, %v62, %v65
    %v83 = vsel %vm81, %v71, 2102212464
    %v84 = vsel %vm80, %v68, %v83
    %v85 = vsel %vm79, %v82, %v84
    %v86 = vsel %vm78, %v65, %v68
    %v87 = vsel %vm81, %v74, 920167782
    %v88 = vsel %vm80, %v71, %v87
    %v89 = vsel %vm79, %v86, %v88
    %v90 = vsel %vm78, %v68, %v71
    %v91 = vsel %vm81, %v77, 1326507024
    %v92 = vsel %vm80, %v74, %v91
    %v93 = vsel %vm79, %v90, %v92
    %v94 = vshll.u32 %v54, 8
    %v95 = vmul.u32.u64.compose %v94, %v93
    %v96 = vextract.low.u32 %v95
    %v97 = vextract.high.u32 %v95
    %v98 = vmul.u32.u64.compose %v94, %v89
    %v99 = vextract.low.u32 %v98
    %v100 = vextract.high.u32 %v98
    %v101 = vmul.u32 %v94, %v85
    %v102 = vadd.s32 %v97, %v99
    %vm103 = vc.u32 %v97, %v99
    %v104 = vadd.s32 %v100, 1
    %v105 = vsel %vm103, %v104, %v100
    %v106 = vadd.s32 %v101, %v105
    %v107 = vadd.s32 %v106, 536870912
    %v108 = vshrl.u32 %v107, 30
    %v109 = vshll.u32 %v108, 30
    %v110 = vsub.s32 %v106, %v109
    %vm111 = vcmp.lt.s32.totalorder %v110, 0
    %v112 = vsub.s32 0, %v110
    %v113 = vsel %vm111, %v112, %v110
    %v114 = vclz %v113
    %v115 = vsub.s32 %v114, 2
    %vm116 = vcmp.gt.s32.totalorder 0, %v115
    %v117 = vsel %vm116, 0, %v115
    %v118 = vsub.s32 32, %v117
    %v119 = vshll.u32 %v110, %v117
    %v120 = vshrl.u32 %v102, %v118
    %v121 = vor.u32 %v119, %v120
    %v122 = vsub.s32 4294967266, %v117
    %v123 = vadd.s32 %v122, 127
    %v124 = vshll.u32 %v123, 23
    %v125 = vor.u32 4788187, %v124
    %v126 = vand.u32 2147483647, %v125
    %v128 = vcvt.s32.f32 %v121
    %v129 = vmul.f32 %v128, %v126
    %v130 = vxor.u32 %v129, 2147483648
    %v131 = vsel %vm48, %v130, %v129
    %v132 = vsub.s32 4, %v108
    %v133 = vsel %vm48, %v132, %v108
    %v134 = vsel %vm47, %v44, %v131
    %v135 = vsel %vm47, 0, %v133
    %v136 = vcosq.f32.pop %v134
    %v137 = vsinq.f32.pop %v134
    %vm138 = vweird.f32 %v44
    %v139 = vand.u32 %v135, 3
    %vm140 = vcmp.lt.s32.totalorder %v139, 2
    %vm141 = vcmp.eq.s32.totalorder %v139, 0
    %v142 = vxor.u32 %v137, 2147483648
    %v143 = vsel %vm141, %v136, %v142
    %vm144 = vcmp.eq.s32.totalorder %v139, 2
    %v145 = vxor.u32 %v136, 2147483648
    %v146 = vsel %vm144, %v145, %v137
    %v147 = vsel %vm140, %v143, %v146
    %v148 = vsel %vm138, nan, %v147
    %v149 = vand.u32 2147483647, %v45
    %vm150 = vcmp.le.f32.partialorder %v149, 0.7853982
    %vm151 = vcmp.lt.s32.totalorder %v45, 0
    %v152 = vand.u32 %v45, 2139095040
    %v153 = vshrl.u32 %v152, 23
    %v154 = vsub.s32 %v153, 127
    %v155 = vand.u32 2147483647, %v45
    %v156 = vand.u32 %v155, 8388607
    %v157 = vor.u32 %v156, 8388608
    %v158 = vsub.s32 0, %v157
    %v159 = vadd.s32 %v154, 1
    %vm160 = vcmp.gt.s32.totalorder %v159, 0
    %v161 = vsel %vm160, %v159, 0
    %v162 = vshrl.u32 %v161, 5
    %v163 = vand.u32 %v161, 31
    %v164 = vsub.s32 32, %v163
    %v165 = vshrl.u32 683565275, %v164
    %v166 = vshll.u32 683565275, %v163
    %v167 = vshrl.u32 2475754826, %v164
    %v168 = vor.u32 %v166, %v167
    %v169 = vshll.u32 2475754826, %v163
    %v170 = vshrl.u32 2131351028, %v164
    %v171 = vor.u32 %v169, %v170
    %v172 = vshll.u32 2131351028, %v163
    %v173 = vshrl.u32 2102212464, %v164
    %v174 = vor.u32 %v172, %v173
    %v175 = vshll.u32 2102212464, %v163
    %v176 = vshrl.u32 920167782, %v164
    %v177 = vor.u32 %v175, %v176
    %v178 = vshll.u32 920167782, %v163
    %v179 = vshrl.u32 1326507024, %v164
    %v180 = vor.u32 %v178, %v179
    %vm181 = vcmp.lt.s32.totalorder %v162, 1
    %vm182 = vcmp.lt.s32.totalorder %v162, 2
    %vm183 = vcmp.lt.s32.totalorder %v162, 3
    %vm184 = vcmp.lt.s32.totalorder %v162, 4
    %v185 = vsel %vm181, %v165, %v168
    %v186 = vsel %vm184, %v174, 2102212464
    %v187 = vsel %vm183, %v171, %v186
    %v188 = vsel %vm182, %v185, %v187
    %v189 = vsel %vm181, %v168, %v171
    %v190 = vsel %vm184, %v177, 920167782
    %v191 = vsel %vm183, %v174, %v190
    %v192 = vsel %vm182, %v189, %v191
    %v193 = vsel %vm181, %v171, %v174
    %v194 = vsel %vm184, %v180, 1326507024
    %v195 = vsel %vm183, %v177, %v194
    %v196 = vsel %vm182, %v193, %v195
    %v197 = vshll.u32 %v157, 8
    %v198 = vmul.u32.u64.compose %v197, %v196
    %v199 = vextract.low.u32 %v198
    %v200 = vextract.high.u32 %v198
    %v201 = vmul.u32.u64.compose %v197, %v192
    %v202 = vextract.low.u32 %v201
    %v203 = vextract.high.u32 %v201
    %v204 = vmul.u32 %v197, %v188
    %v205 = vadd.s32 %v200, %v202
    %vm206 = vc.u32 %v200, %v202
    %v207 = vadd.s32 %v203, 1
    %v208 = vsel %vm206, %v207, %v203
    %v209 = vadd.s32 %v204, %v208
    %v210 = vadd.s32 %v209, 536870912
    %v211 = vshrl.u32 %v210, 30
    %v212 = vshll.u32 %v211, 30
    %v213 = vsub.s32 %v209, %v212
    %vm214 = vcmp.lt.s32.totalorder %v213, 0
    %v215 = vsub.s32 0, %v213
    %v216 = vsel %vm214, %v215, %v213
    %v217 = vclz %v216
    %v218 = vsub.s32 %v217, 2
    %vm219 = vcmp.gt.s32.totalorder 0, %v218
    %v220 = vsel %vm219, 0, %v218
    %v221 = vsub.s32 32, %v220
    %v222 = vshll.u32 %v213, %v220
    %v223 = vshrl.u32 %v205, %v221
    %v224 = vor.u32 %v222, %v223
    %v225 = vsub.s32 4294967266, %v220
    %v226 = vadd.s32 %v225, 127
    %v227 = vshll.u32 %v226, 23
    %v228 = vor.u32 4788187, %v227
    %v229 = vand.u32 2147483647, %v228
    %v231 = vcvt.s32.f32 %v224
    %v232 = vmul.f32 %v231, %v229
    %v233 = vxor.u32 %v232, 2147483648
    %v234 = vsel %vm151, %v233, %v232
    %v235 = vsub.s32 4, %v211
    %v236 = vsel %vm151, %v235, %v211
    %v237 = vsel %vm150, %v45, %v234
    %v238 = vsel %vm150, 0, %v236
    %v239 = vcosq.f32.pop %v237
    %v240 = vsinq.f32.pop %v237
    %vm241 = vweird.f32 %v45
    %v242 = vand.u32 %v238, 3
    %vm243 = vcmp.lt.s32.totalorder %v242, 2
    %vm244 = vcmp.eq.s32.totalorder %v242, 0
    %v245 = vxor.u32 %v240, 2147483648
    %v246 = vsel %vm244, %v239, %v245
    %vm247 = vcmp.eq.s32.totalorder %v242, 2
    %v248 = vxor.u32 %v239, 2147483648
    %v249 = vsel %vm247, %v248, %v240
    %v250 = vsel %vm243, %v246, %v249
    %v251 = vsel %vm241, nan, %v250
    %252 = vst [vmem:[#allocation5] sm:$0xff] %v148
    %253 = vst [vmem:[#allocation5 + $0x8] sm:$0xff] %v251
    %v254 = vand.u32 2147483647, %v44
    %vm255 = vcmp.le.f32.partialorder %v254, 0.7853982
    %vm256 = vcmp.lt.s32.totalorder %v44, 0
    %v257 = vand.u32 %v44, 2139095040
    %v258 = vshrl.u32 %v257, 23
    %v259 = vsub.s32 %v258, 127
    %v260 = vand.u32 2147483647, %v44
    %v261 = vand.u32 %v260, 8388607
    %v262 = vor.u32 %v261, 8388608
    %v263 = vsub.s32 0, %v262
    %v264 = vadd.s32 %v259, 1
    %vm265 = vcmp.gt.s32.totalorder %v264, 0
    %v266 = vsel %vm265, %v264, 0
    %v267 = vshrl.u32 %v266, 5
    %v268 = vand.u32 %v266, 31
    %v269 = vsub.s32 32, %v268
    %v270 = vshrl.u32 683565275, %v269
    %v271 = vshll.u32 683565275, %v268
    %v272 = vshrl.u32 2475754826, %v269
    %v273 = vor.u32 %v271, %v272
    %v274 = vshll.u32 2475754826, %v268
    %v275 = vshrl.u32 2131351028, %v269
    %v276 = vor.u32 %v274, %v275
    %v277 = vshll.u32 2131351028, %v268
    %v278 = vshrl.u32 2102212464, %v269
    %v279 = vor.u32 %v277, %v278
    %v280 = vshll.u32 2102212464, %v268
    %v281 = vshrl.u32 920167782, %v269
    %v282 = vor.u32 %v280, %v281
    %v283 = vshll.u32 920167782, %v268
    %v284 = vshrl.u32 1326507024, %v269
    %v285 = vor.u32 %v283, %v284
    %vm286 = vcmp.lt.s32.totalorder %v267, 1
    %vm287 = vcmp.lt.s32.totalorder %v267, 2
    %vm288 = vcmp.lt.s32.totalorder %v267, 3
    %vm289 = vcmp.lt.s32.totalorder %v267, 4
    %v290 = vsel %vm286, %v270, %v273
    %v291 = vsel %vm289, %v279, 2102212464
    %v292 = vsel %vm288, %v276, %v291
    %v293 = vsel %vm287, %v290, %v292
    %v294 = vsel %vm286, %v273, %v276
    %v295 = vsel %vm289, %v282, 920167782
    %v296 = vsel %vm288, %v279, %v295
    %v297 = vsel %vm287, %v294, %v296
    %v298 = vsel %vm286, %v276, %v279
    %v299 = vsel %vm289, %v285, 1326507024
    %v300 = vsel %vm288, %v282, %v299
    %v301 = vsel %vm287, %v298, %v300
    %v302 = vshll.u32 %v262, 8
    %v303 = vmul.u32.u64.compose %v302, %v301
    %v304 = vextract.low.u32 %v303
    %v305 = vextract.high.u32 %v303
    %v306 = vmul.u32.u64.compose %v302, %v297
    %v307 = vextract.low.u32 %v306
    %v308 = vextract.high.u32 %v306
    %v309 = vmul.u32 %v302, %v293
    %v310 = vadd.s32 %v305, %v307
    %vm311 = vc.u32 %v305, %v307
    %v312 = vadd.s32 %v308, 1
    %v313 = vsel %vm311, %v312, %v308
    %v314 = vadd.s32 %v309, %v313
    %v315 = vadd.s32 %v314, 536870912
    %v316 = vshrl.u32 %v315, 30
    %v317 = vshll.u32 %v316, 30
    %v318 = vsub.s32 %v314, %v317
    %vm319 = vcmp.lt.s32.totalorder %v318, 0
    %v320 = vsub.s32 0, %v318
    %v321 = vsel %vm319, %v320, %v318
    %v322 = vclz %v321
    %v323 = vsub.s32 %v322, 2
    %vm324 = vcmp.gt.s32.totalorder 0, %v323
    %v325 = vsel %vm324, 0, %v323
    %v326 = vsub.s32 32, %v325
    %v327 = vshll.u32 %v318, %v325
    %v328 = vshrl.u32 %v310, %v326
    %v329 = vor.u32 %v327, %v328
    %v330 = vsub.s32 4294967266, %v325
    %v331 = vadd.s32 %v330, 127
    %v332 = vshll.u32 %v331, 23
    %v333 = vor.u32 4788187, %v332
    %v334 = vand.u32 2147483647, %v333
    %v336 = vcvt.s32.f32 %v329
    %v337 = vmul.f32 %v336, %v334
    %v338 = vxor.u32 %v337, 2147483648
    %v339 = vsel %vm256, %v338, %v337
    %v340 = vsub.s32 4, %v316
    %v341 = vsel %vm256, %v340, %v316
    %v342 = vsel %vm255, %v44, %v339
    %v343 = vsel %vm255, 0, %v341
    %v344 = vcosq.f32.pop %v342
    %v345 = vsinq.f32.pop %v342
    %vm346 = vweird.f32 %v44
    %v347 = vadd.s32 %v343, 3
    %v348 = vand.u32 %v347, 3
    %vm349 = vcmp.lt.s32.totalorder %v348, 2
    %vm350 = vcmp.eq.s32.totalorder %v348, 0
    %v351 = vxor.u32 %v345, 2147483648
    %v352 = vsel %vm350, %v344, %v351
    %vm353 = vcmp.eq.s32.totalorder %v348, 2
    %v354 = vxor.u32 %v344, 2147483648
    %v355 = vsel %vm353, %v354, %v345
    %v356 = vsel %vm349, %v352, %v355
    %v357 = vsel %vm346, nan, %v356
    %v358 = vand.u32 2147483647, %v45
    %vm359 = vcmp.le.f32.partialorder %v358, 0.7853982
    %vm360 = vcmp.lt.s32.totalorder %v45, 0
    %v361 = vand.u32 %v45, 2139095040
    %v362 = vshrl.u32 %v361, 23
    %v363 = vsub.s32 %v362, 127
    %v364 = vand.u32 2147483647, %v45
    %v365 = vand.u32 %v364, 8388607
    %v366 = vor.u32 %v365, 8388608
    %v367 = vsub.s32 0, %v366
    %v368 = vadd.s32 %v363, 1
    %vm369 = vcmp.gt.s32.totalorder %v368, 0
    %v370 = vsel %vm369, %v368, 0
    %v371 = vshrl.u32 %v370, 5
    %v372 = vand.u32 %v370, 31
    %v373 = vsub.s32 32, %v372
    %v374 = vshrl.u32 683565275, %v373
    %v375 = vshll.u32 683565275, %v372
    %v376 = vshrl.u32 2475754826, %v373
    %v377 = vor.u32 %v375, %v376
    %v378 = vshll.u32 2475754826, %v372
    %v379 = vshrl.u32 2131351028, %v373
    %v380 = vor.u32 %v378, %v379
    %v381 = vshll.u32 2131351028, %v372
    %v382 = vshrl.u32 2102212464, %v373
    %v383 = vor.u32 %v381, %v382
    %v384 = vshll.u32 2102212464, %v372
    %v385 = vshrl.u32 920167782, %v373
    %v386 = vor.u32 %v384, %v385
    %v387 = vshll.u32 920167782, %v372
    %v388 = vshrl.u32 1326507024, %v373
    %v389 = vor.u32 %v387, %v388
    %vm390 = vcmp.lt.s32.totalorder %v371, 1
    %vm391 = vcmp.lt.s32.totalorder %v371, 2
    %vm392 = vcmp.lt.s32.totalorder %v371, 3
    %vm393 = vcmp.lt.s32.totalorder %v371, 4
    %v394 = vsel %vm390, %v374, %v377
    %v395 = vsel %vm393, %v383, 2102212464
    %v396 = vsel %vm392, %v380, %v395
    %v397 = vsel %vm391, %v394, %v396
    %v398 = vsel %vm390, %v377, %v380
    %v399 = vsel %vm393, %v386, 920167782
    %v400 = vsel %vm392, %v383, %v399
    %v401 = vsel %vm391, %v398, %v400
    %v402 = vsel %vm390, %v380, %v383
    %v403 = vsel %vm393, %v389, 1326507024
    %v404 = vsel %vm392, %v386, %v403
    %v405 = vsel %vm391, %v402, %v404
    %v406 = vshll.u32 %v366, 8
    %v407 = vmul.u32.u64.compose %v406, %v405
    %v408 = vextract.low.u32 %v407
    %v409 = vextract.high.u32 %v407
    %v410 = vmul.u32.u64.compose %v406, %v401
    %v411 = vextract.low.u32 %v410
    %v412 = vextract.high.u32 %v410
    %v413 = vmul.u32 %v406, %v397
    %v414 = vadd.s32 %v409, %v411
    %vm415 = vc.u32 %v409, %v411
    %v416 = vadd.s32 %v412, 1
    %v417 = vsel %vm415, %v416, %v412
    %v418 = vadd.s32 %v413, %v417
    %v419 = vadd.s32 %v418, 536870912
    %v420 = vshrl.u32 %v419, 30
    %v421 = vshll.u32 %v420, 30
    %v422 = vsub.s32 %v418, %v421
    %vm423 = vcmp.lt.s32.totalorder %v422, 0
    %v424 = vsub.s32 0, %v422
    %v425 = vsel %vm423, %v424, %v422
    %v426 = vclz %v425
    %v427 = vsub.s32 %v426, 2
    %vm428 = vcmp.gt.s32.totalorder 0, %v427
    %v429 = vsel %vm428, 0, %v427
    %v430 = vsub.s32 32, %v429
    %v431 = vshll.u32 %v422, %v429
    %v432 = vshrl.u32 %v414, %v430
    %v433 = vor.u32 %v431, %v432
    %v434 = vsub.s32 4294967266, %v429
    %v435 = vadd.s32 %v434, 127
    %v436 = vshll.u32 %v435, 23
    %v437 = vor.u32 4788187, %v436
    %v438 = vand.u32 2147483647, %v437
    %v440 = vcvt.s32.f32 %v433
    %v441 = vmul.f32 %v440, %v438
    %v442 = vxor.u32 %v441, 2147483648
    %v443 = vsel %vm360, %v442, %v441
    %v444 = vsub.s32 4, %v420
    %v445 = vsel %vm360, %v444, %v420
    %v446 = vsel %vm359, %v45, %v443
    %v447 = vsel %vm359, 0, %v445
    %v448 = vcosq.f32.pop %v446
    %v449 = vsinq.f32.pop %v446
    %vm450 = vweird.f32 %v45
    %v451 = vadd.s32 %v447, 3
    %v452 = vand.u32 %v451, 3
    %vm453 = vcmp.lt.s32.totalorder %v452, 2
    %vm454 = vcmp.eq.s32.totalorder %v452, 0
    %v455 = vxor.u32 %v449, 2147483648
    %v456 = vsel %vm454, %v448, %v455
    %vm457 = vcmp.eq.s32.totalorder %v452, 2
    %v458 = vxor.u32 %v448, 2147483648
    %v459 = vsel %vm457, %v458, %v449
    %v460 = vsel %vm453, %v456, %v459
    %v461 = vsel %vm450, nan, %v460
    %462 = vst [vmem:[#allocation6] sm:$0xff] %v357
    %463 = vst [vmem:[#allocation6 + $0x8] sm:$0xff] %v461
    // Predicated region
    $region10: #{tpu_custom_call.1} parent=1 // pred_check
      _
    $region11: #{tpu_custom_call.1} parent=1 // pred_check_branch
      %465 = sbr.rel (0) target = $region13
    $region12: #{tpu_custom_call.1} parent=1 // pred_region
      %s467 = ssub.s32 256, 64
      %468 = vsyncadd [#allocation4], %s467
      %s469 = sshll.u32 [#allocation5], 4
      %s470 = int_to_ptr.vmem [resolvable:$true] %s469
      %475 = dma.vmem_to_hbm [thread:$0]  %s470, 64, %s1, [#allocation4], 64, 64, 4
    $region13: #{tpu_custom_call.1} parent=1 // pred_fallthru
      _
    // Predicated region
    $region14: #{tpu_custom_call.1} parent=1 // pred_check
      _
    $region15: #{tpu_custom_call.1} parent=1 // pred_check_branch
      %477 = sbr.rel (0) target = $region17
    $region16: #{tpu_custom_call.1} parent=1 // pred_region
      %s479 = ssub.s32 256, 64
      %480 = vsyncadd [#allocation7], %s479
      %s481 = sshll.u32 [#allocation6], 4
      %s482 = int_to_ptr.vmem [resolvable:$true] %s481
      %487 = dma.vmem_to_hbm [thread:$0]  %s482, 64, %s2, [#allocation7], 64, 64, 4
    $region17: #{tpu_custom_call.1} parent=1 // pred_fallthru
      _
    // Predicated region
    $region18: #{tpu_custom_call.1} parent=1 // pred_check
      _
    $region19: #{tpu_custom_call.1} parent=1 // pred_check_branch
      %489 = sbr.rel (0) target = $region21
    $region20: #{tpu_custom_call.1} parent=1 // pred_region
      %490 = dma.done [#allocation4], 256
    $region21: #{tpu_custom_call.1} parent=1 // pred_fallthru
      _
    // Predicated region
    $region22: #{tpu_custom_call.1} parent=1 // pred_check
      _
    $region23: #{tpu_custom_call.1} parent=1 // pred_check_branch
      %492 = sbr.rel (0) target = $region25
    $region24: #{tpu_custom_call.1} parent=1 // pred_region
      %493 = dma.done [#allocation7], 256
    $region25: #{tpu_custom_call.1} parent=1 // pred_fallthru
      _
    %494 = vsyncpa [#allocation3], 1
    %495 = vsyncpa [#allocation4], 1
    %496 = vsyncpa [#allocation7], 1

</llo_original>
